<compile_context>
chip_gen: v7x
topology: tpu7x:2x2x1
jax: 0.10.0
libtpu: 0.0.40
codegen_flags: <defaults>
</compile_context>

<pallas_src>
import math

import jax
import jax.numpy as jnp
from jax.experimental import pallas as pl
from jax.experimental.pallas import tpu as pltpu

# ---- problem configuration (small, consistent with the module) -------------
B = 2                  # batch
N = 64                 # sequence length (tokens)
IN_FEATURES = 32       # model dim
HIDDEN_FEATURES = 128  # 4 * dim  (ViT convention; lane-dense hidden axis)
OUT_FEATURES = 32      # defaults to in_features in the module
M = B * N              # rows after folding batch into the row axis

# Rows per grid step.  64 here so the toy problem exercises a real multi-step
# pipeline (grid=(2,)).  Scaling rule: pick the largest multiple of 16 (bf16
# sublane pack) whose per-step footprint
#   2 * TILE_M*(IN + OUT) bytes   (double-buffered bf16 x / f32 out blocks)
# + (IN*HID + HID*OUT)*2 bytes    (resident bf16 weights)
# + TILE_M*HID*4 bytes            (f32 hidden intermediate)
# fits the scoped VMEM budget: ~256-512 on v5e/v6e (128 MiB), ~128-256 on v7x
# (64 MiB).  For v6e/v7x at production dims, also size the hidden/K tiles to
# multiples of 256 (2x256^2 MXU passes); HIDDEN=128 is kept here only because
# it is the module's 4*dim.
TILE_M = 64
assert M % TILE_M == 0

_INV_SQRT2 = 1.0 / math.sqrt(2.0)


def _erf(z):
    """Abramowitz & Stegun 7.1.26 rational erf approximation, |err| < 1.5e-7.

    Built from mul/add/exp/select plus an EUP approx-reciprocal so every op
    lowers on Mosaic and the divide stays off the VALU.
    """
    a1, a2, a3, a4, a5 = (0.254829592, -0.284496736, 1.421413741,
                          -1.453152027, 1.061405429)
    p = 0.3275911
    az = jnp.abs(z)
    # EUP vrcp instead of a VALU Newton-Raphson divide (~1e-4 rel err, well
    # inside the kernel's bf16-level tolerance).
    t = pl.reciprocal(1.0 + p * az, approx=True)
    poly = ((((a5 * t + a4) * t + a3) * t + a2) * t + a1) * t
    pos = 1.0 - poly * jnp.exp(-az * az)
    return jnp.where(z >= 0.0, pos, -pos)


def _gelu_exact(x):
    # nn.GELU() default (approximate='none'): 0.5*x*(1 + erf(x/sqrt(2)))
    return 0.5 * x * (1.0 + _erf(x * _INV_SQRT2))


def mlp_kernel(x_ref, w1_ref, b1_ref, w2_ref, b2_ref, o_ref):
    """One row-tile of the MLP.

    x_ref : (TILE_M, IN)    bf16 activations (row tile)
    w1_ref: (IN, HIDDEN)    bf16 fc1 weight (grid-invariant, VMEM resident)
    b1_ref: (1, HIDDEN)     f32  fc1 bias
    w2_ref: (HIDDEN, OUT)   bf16 fc2 weight (grid-invariant, VMEM resident)
    b2_ref: (1, OUT)        f32  fc2 bias
    o_ref : (TILE_M, OUT)   f32  output row tile
    """
    x = x_ref[...]                                                  # bf16

    # fc1: bf16 x bf16 -> f32 accumulate on the MXU.
    h = jnp.dot(x, w1_ref[...], preferred_element_type=jnp.float32)
    h = h + b1_ref[...]                                             # f32 epilogue
    h = _gelu_exact(h)                                              # f32 GELU

    # fc2: cast the hidden activation to bf16 only as the matmul LHS.
    y = jnp.dot(h.astype(jnp.bfloat16), w2_ref[...],
                preferred_element_type=jnp.float32)
    y = y + b2_ref[...]

    # TODO(synk): nn.Dropout(p=0.0) is an identity in eval / with p=0 -> omitted.
    o_ref[...] = y.astype(o_ref.dtype)


@jax.jit
def mlp_pallas(x, w1, b1, w2, b2):
    b_, n_, _ = x.shape
    m = b_ * n_
    # Fold batch into rows and move MXU operands to bf16 before the call so
    # the x DMA and the resident weight blocks carry half the bytes.
    x2d = x.reshape(m, IN_FEATURES).astype(jnp.bfloat16)
    w1b = w1.astype(jnp.bfloat16)
    w2b = w2.astype(jnp.bfloat16)

    out = pl.pallas_call(
        mlp_kernel,
        out_shape=jax.ShapeDtypeStruct((m, OUT_FEATURES), jnp.float32),
        grid_spec=pltpu.PrefetchScalarGridSpec(
            num_scalar_prefetch=0,
            grid=(m // TILE_M,),
            in_specs=[
                pl.BlockSpec((TILE_M, IN_FEATURES), lambda i: (i, 0)),
                pl.BlockSpec((IN_FEATURES, HIDDEN_FEATURES), lambda i: (0, 0)),
                pl.BlockSpec((1, HIDDEN_FEATURES), lambda i: (0, 0)),
                pl.BlockSpec((HIDDEN_FEATURES, OUT_FEATURES), lambda i: (0, 0)),
                pl.BlockSpec((1, OUT_FEATURES), lambda i: (0, 0)),
            ],
            out_specs=pl.BlockSpec((TILE_M, OUT_FEATURES), lambda i: (i, 0)),
        ),
        compiler_params=pltpu.CompilerParams(
            # Row tiles are independent -> shard across v7x's 2 TensorCores.
            dimension_semantics=("parallel",),
            # Budget sized for the smallest generation (v7x: 64 MiB physical,
            # 32 MiB scoped default); per-step footprint here is ~70 KB.
            vmem_limit_bytes=32 * 1024 * 1024,
        ),
    )(x2d, w1b, b1, w2b, b2)
    return out.reshape(b_, n_, OUT_FEATURES)


def mlp_reference(x, w1, b1, w2, b2):
    """Pure-JAX f32 reference mirroring the PyTorch Mlp forward (exact GELU)."""
    h = jnp.dot(x, w1, precision=jax.lax.Precision.HIGHEST) + b1[0]
    h = jax.nn.gelu(h, approximate=False)
    return jnp.dot(h, w2, precision=jax.lax.Precision.HIGHEST) + b2[0]


if __name__ == "__main__":
    key = jax.random.PRNGKey(0)
    kx, kw1, kb1, kw2, kb2 = jax.random.split(key, 5)

    x = jax.random.normal(kx, (B, N, IN_FEATURES), dtype=jnp.float32)

    # Deterministic synthetic parameters (not a checkpoint).
    w1 = jax.random.normal(kw1, (IN_FEATURES, HIDDEN_FEATURES),
                           dtype=jnp.float32) * (IN_FEATURES ** -0.5)
    b1 = jax.random.normal(kb1, (1, HIDDEN_FEATURES), dtype=jnp.float32) * 0.02
    w2 = jax.random.normal(kw2, (HIDDEN_FEATURES, OUT_FEATURES),
                           dtype=jnp.float32) * (HIDDEN_FEATURES ** -0.5)
    b2 = jax.random.normal(kb2, (1, OUT_FEATURES), dtype=jnp.float32) * 0.02

    out = mlp_pallas(x, w1, b1, w2, b2)
    out = jax.block_until_ready(out)

    ref = mlp_reference(x, w1, b1, w2, b2)
    assert out.shape == (B, N, OUT_FEATURES)
    # Tolerance reflects bf16 MXU operands (f32 accumulation) vs. the f32
    # HIGHEST-precision reference, plus the ~1e-4-level erf/reciprocal approx.
    max_diff = float(jnp.max(jnp.abs(out - ref)))
    assert jnp.allclose(out, ref, atol=6e-2, rtol=5e-2), max_diff

    print("KERNEL_OK")
</pallas_src>

<mosaic_0001>
module attributes {stable_mosaic.version = 11 : i64} {
  func.func @mlp_kernel(%arg0: i32, %arg1: memref<64x32xbf16, #tpu.memory_space<vmem>>, %arg2: memref<32x128xbf16, #tpu.memory_space<vmem>>, %arg3: memref<1x128xf32, #tpu.memory_space<vmem>>, %arg4: memref<128x32xbf16, #tpu.memory_space<vmem>>, %arg5: memref<1x32xf32, #tpu.memory_space<vmem>>, %arg6: memref<64x32xf32, #tpu.memory_space<vmem>>) attributes {dimension_semantics = [#tpu.dimension_semantics<parallel>], iteration_bounds = array<i64: 2>, scalar_prefetch = 0 : i64, scratch_operands = 0 : i64, tpu.core_type = #tpu.core_type<tc>, window_params = [{transform_indices = @transform_0, window_bounds = array<i64: 64, 32>}, {pipeline_mode = #tpu.pipeline_mode<synchronous>, transform_indices = @transform_1, window_bounds = array<i64: 32, 128>}, {pipeline_mode = #tpu.pipeline_mode<synchronous>, transform_indices = @transform_2, window_bounds = array<i64: 1, 128>}, {pipeline_mode = #tpu.pipeline_mode<synchronous>, transform_indices = @transform_3, window_bounds = array<i64: 128, 32>}, {pipeline_mode = #tpu.pipeline_mode<synchronous>, transform_indices = @transform_4, window_bounds = array<i64: 1, 32>}, {transform_indices = @transform_5, window_bounds = array<i64: 64, 32>}]} {
    %c0 = arith.constant 0 : index
    %c0_0 = arith.constant 0 : index
    %0 = vector.load %arg1[%c0, %c0_0] : memref<64x32xbf16, #tpu.memory_space<vmem>>, vector<64x32xbf16>
    %c0_1 = arith.constant 0 : index
    %c0_2 = arith.constant 0 : index
    %1 = vector.load %arg2[%c0_1, %c0_2] : memref<32x128xbf16, #tpu.memory_space<vmem>>, vector<32x128xbf16>
    %cst = arith.constant dense<0.000000e+00> : vector<64x128xf32>
    %2 = tpu.matmul %0, %1, %cst {dimension_numbers = #tpu.dot_dimension_numbers<[1], [0], [0], [1], [0, 0, 1, 1], [], []>} : vector<64x32xbf16>, vector<32x128xbf16>, vector<64x128xf32> -> vector<64x128xf32>
    %c0_3 = arith.constant 0 : index
    %c0_4 = arith.constant 0 : index
    %3 = vector.load %arg3[%c0_3, %c0_4] : memref<1x128xf32, #tpu.memory_space<vmem>>, vector<1x128xf32>
    %4 = vector.broadcast %3 : vector<1x128xf32> to vector<64x128xf32>
    %5 = arith.addf %2, %4 : vector<64x128xf32>
    %cst_5 = arith.constant 5.000000e-01 : f32
    %6 = vector.broadcast %cst_5 : f32 to vector<64x128xf32>
    %7 = arith.mulf %6, %5 : vector<64x128xf32>
    %cst_6 = arith.constant 0.707106769 : f32
    %8 = vector.broadcast %cst_6 : f32 to vector<64x128xf32>
    %9 = arith.mulf %5, %8 : vector<64x128xf32>
    %10 = math.absf %9 : vector<64x128xf32>
    %cst_7 = arith.constant 0.327591091 : f32
    %11 = vector.broadcast %cst_7 : f32 to vector<64x128xf32>
    %12 = arith.mulf %11, %10 : vector<64x128xf32>
    %cst_8 = arith.constant 1.000000e+00 : f32
    %13 = vector.broadcast %cst_8 : f32 to vector<64x128xf32>
    %14 = arith.addf %13, %12 : vector<64x128xf32>
    %15 = tpu.reciprocal %14 {approx = true} : vector<64x128xf32> -> vector<64x128xf32>
    %cst_9 = arith.constant 1.06140542 : f32
    %16 = vector.broadcast %cst_9 : f32 to vector<64x128xf32>
    %17 = arith.mulf %16, %15 : vector<64x128xf32>
    %cst_10 = arith.constant -1.45315206 : f32
    %18 = vector.broadcast %cst_10 : f32 to vector<64x128xf32>
    %19 = arith.addf %17, %18 : vector<64x128xf32>
    %20 = arith.mulf %19, %15 : vector<64x128xf32>
    %cst_11 = arith.constant 1.42141378 : f32
    %21 = vector.broadcast %cst_11 : f32 to vector<64x128xf32>
    %22 = arith.addf %20, %21 : vector<64x128xf32>
    %23 = arith.mulf %22, %15 : vector<64x128xf32>
    %cst_12 = arith.constant -0.284496725 : f32
    %24 = vector.broadcast %cst_12 : f32 to vector<64x128xf32>
    %25 = arith.addf %23, %24 : vector<64x128xf32>
    %26 = arith.mulf %25, %15 : vector<64x128xf32>
    %cst_13 = arith.constant 0.254829586 : f32
    %27 = vector.broadcast %cst_13 : f32 to vector<64x128xf32>
    %28 = arith.addf %26, %27 : vector<64x128xf32>
    %29 = arith.mulf %28, %15 : vector<64x128xf32>
    %cst_14 = arith.constant 0.000000e+00 : f32
    %30 = vector.broadcast %cst_14 : f32 to vector<64x128xf32>
    %31 = arith.subf %30, %10 : vector<64x128xf32>
    %32 = arith.mulf %31, %10 : vector<64x128xf32>
    %33 = math.exp %32 : vector<64x128xf32>
    %34 = arith.mulf %29, %33 : vector<64x128xf32>
    %cst_15 = arith.constant 1.000000e+00 : f32
    %35 = vector.broadcast %cst_15 : f32 to vector<64x128xf32>
    %36 = arith.subf %35, %34 : vector<64x128xf32>
    %cst_16 = arith.constant 0.000000e+00 : f32
    %37 = vector.broadcast %cst_16 : f32 to vector<64x128xf32>
    %38 = arith.cmpf oge, %9, %37 : vector<64x128xf32>
    %cst_17 = arith.constant 0.000000e+00 : f32
    %39 = vector.broadcast %cst_17 : f32 to vector<64x128xf32>
    %40 = arith.subf %39, %36 : vector<64x128xf32>
    %41 = arith.select %38, %36, %40 : vector<64x128xi1>, vector<64x128xf32>
    %cst_18 = arith.constant 1.000000e+00 : f32
    %42 = vector.broadcast %cst_18 : f32 to vector<64x128xf32>
    %43 = arith.addf %42, %41 : vector<64x128xf32>
    %44 = arith.mulf %7, %43 : vector<64x128xf32>
    %45 = arith.truncf %44 : vector<64x128xf32> to vector<64x128xbf16>
    %c0_19 = arith.constant 0 : index
    %c0_20 = arith.constant 0 : index
    %46 = vector.load %arg4[%c0_19, %c0_20] : memref<128x32xbf16, #tpu.memory_space<vmem>>, vector<128x32xbf16>
    %cst_21 = arith.constant dense<0.000000e+00> : vector<64x32xf32>
    %47 = tpu.matmul %45, %46, %cst_21 {dimension_numbers = #tpu.dot_dimension_numbers<[1], [0], [0], [1], [0, 0, 1, 1], [], []>} : vector<64x128xbf16>, vector<128x32xbf16>, vector<64x32xf32> -> vector<64x32xf32>
    %c0_22 = arith.constant 0 : index
    %c0_23 = arith.constant 0 : index
    %48 = vector.load %arg5[%c0_22, %c0_23] : memref<1x32xf32, #tpu.memory_space<vmem>>, vector<1x32xf32>
    %49 = vector.broadcast %48 : vector<1x32xf32> to vector<64x32xf32>
    %50 = arith.addf %47, %49 : vector<64x32xf32>
    %c0_24 = arith.constant 0 : index
    %c0_25 = arith.constant 0 : index
    %51 = vector.load %arg6[%c0_24, %c0_25] : memref<64x32xf32, #tpu.memory_space<vmem>>, vector<64x32xf32>
    tpu.vector_store %arg6[%c0_24, %c0_25], %50 {strides = array<i32>} : memref<64x32xf32, #tpu.memory_space<vmem>>, vector<64x32xf32>,
    return
  }
  func.func @transform_0(%arg0: i32) -> (i32, i32) {
    %c0_i32 = arith.constant 0 : i32
    %c0_i32_0 = arith.constant 0 : i32
    return %arg0, %c0_i32 : i32, i32
  }
  func.func @transform_1(%arg0: i32) -> (i32, i32) {
    %c0_i32 = arith.constant 0 : i32
    %c0_i32_0 = arith.constant 0 : i32
    %c0_i32_1 = arith.constant 0 : i32
    return %c0_i32, %c0_i32_0 : i32, i32
  }
  func.func @transform_2(%arg0: i32) -> (i32, i32) {
    %c0_i32 = arith.constant 0 : i32
    %c0_i32_0 = arith.constant 0 : i32
    %c0_i32_1 = arith.constant 0 : i32
    return %c0_i32, %c0_i32_0 : i32, i32
  }
  func.func @transform_3(%arg0: i32) -> (i32, i32) {
    %c0_i32 = arith.constant 0 : i32
    %c0_i32_0 = arith.constant 0 : i32
    %c0_i32_1 = arith.constant 0 : i32
    return %c0_i32, %c0_i32_0 : i32, i32
  }
  func.func @transform_4(%arg0: i32) -> (i32, i32) {
    %c0_i32 = arith.constant 0 : i32
    %c0_i32_0 = arith.constant 0 : i32
    %c0_i32_1 = arith.constant 0 : i32
    return %c0_i32, %c0_i32_0 : i32, i32
  }
  func.func @transform_5(%arg0: i32) -> (i32, i32) {
    %c0_i32 = arith.constant 0 : i32
    %c0_i32_0 = arith.constant 0 : i32
    return %arg0, %c0_i32 : i32, i32
  }
}

</mosaic_0001>

<llo_original>
// kernel: mlp_pallas.1
$region0: #{mlp_pallas.1}
  #allocation0 [shape = 'u32[]', space=smem, size = 0x4, offset = 0x4, fixed_abs, tag = 'smem constant byte address 0x4 - core index']
  #allocation1 [shape = 'u32[144,128]{1,0:T(1,128)}', space=vmem, size = 0x12000, scoped, tag = 'internal scratch']
  %s0 = inlined_call_operand.vmem [shape: bf16[128,32], index: 0, kind: input, shape index: {}]
  %s1 = inlined_call_operand.vmem [shape: bf16[32,128], index: 1, kind: input, shape index: {}]
  %s2 = inlined_call_operand.vmem [shape: f32[1,128], index: 2, kind: input, shape index: {}]
  %s3 = inlined_call_operand.vmem [shape: bf16[128,32], index: 3, kind: input, shape index: {}]
  %s4 = inlined_call_operand.vmem [shape: f32[1,32], index: 4, kind: input, shape index: {}]
  %s5 = inlined_call_operand.vmem [shape: f32[128,32], index: 5, kind: output, shape index: {}]
  %s6 = sld [smem:[#allocation0]]
  $region53: #{mlp_pallas.1} parent=0
    _
  %s8 = ssub.s32 1, %s6
  %s9 = scalar_select 0, %s8, %s6
  loop: start=0, step=1, limit=4
  $region2: #{mlp_pallas.1} parent=0 // loop_pre_header
    _
  $region3: #{mlp_pallas.1} parent=0 // loop_header
    %s11 = sphi 0, %s15
    %p12 = scmp.ge.s32.totalorder %s11, 4
    %s21 = sphi 0, %s23
    %s24 = sphi 0, %s21
    %s25 = sphi 0, %s24
    %s41 = sphi 0, %s25
    %s45 = sphi 0, %s45
    %s47 = sphi 0, %s45
    %s48 = sphi 0, %s47
    %s62 = sphi 0, %s48
    %s66 = sphi 0, %s66
    %s68 = sphi 0, %s66
    %s69 = sphi 0, %s68
    %s83 = sphi 0, %s69
    %s87 = sphi 0, %s87
    %s89 = sphi 0, %s87
    %s90 = sphi 0, %s89
    %s104 = sphi 0, %s90
    %s108 = sphi 0, %s108
    %s110 = sphi 0, %s108
    %s111 = sphi 0, %s110
    %s125 = sphi 0, %s111
    %s131 = sphi 0, %s133
    %s134 = sphi 0, %s131
    %s135 = sphi 0, %s134
    %s151 = sphi 0, %s135
  $region4: #{mlp_pallas.1} parent=0 // loop_header_branch
    %14 = sbr.rel (%p12) target = $region8
  $region5: #{mlp_pallas.1} parent=0 // loop_body
    %s16 = ssub.s32 %s11, 1
    %s17 = ssub.s32 %s11, 2
    %s18 = sadd.s32 %s11, 1
    %s19 = ssub.s32 %s11, %s18
    %p20 = scmp.eq.s32.totalorder %s19, 0
    %s22 = sadd.s32 %s21, 1
    %s23 = scalar_select %p20, %s21, %s22
    %p26 = pneg %p20
    %p27 = scmp.eq.s32.totalorder %s11, 1
    %p28 = por %p26, %p27
    %p29 = scmp.ne.s32.totalorder %s21, %s24
    %p30 = scmp.eq.s32.totalorder %s11, 0
    %p31 = por %p29, %p30
    %p32 = scmp.ne.s32.totalorder %s21, %s24
    %p33 = scmp.eq.s32.totalorder %s16, 1
    %p34 = por %p32, %p33
    %p35 = scmp.ne.s32.totalorder %s24, %s25
    %p36 = scmp.eq.s32.totalorder %s16, 0
    %p37 = por %p35, %p36
    %p38 = scmp.ne.s32.totalorder %s24, %s25
    %p39 = scmp.eq.s32.totalorder %s17, 1
    %p40 = por %p38, %p39
    %p42 = scmp.ne.s32.totalorder %s25, %s41
    %p43 = scmp.eq.s32.totalorder %s17, 0
    %p44 = por %p42, %p43
    %s46 = sadd.s32 %s45, 1
    %p49 = scmp.eq.s32.totalorder %s11, 1
    %p50 = scmp.ne.s32.totalorder %s45, %s47
    %p51 = scmp.eq.s32.totalorder %s11, 0
    %p52 = por %p50, %p51
    %p53 = scmp.ne.s32.totalorder %s45, %s47
    %p54 = scmp.eq.s32.totalorder %s16, 1
    %p55 = por %p53, %p54
    %p56 = scmp.ne.s32.totalorder %s47, %s48
    %p57 = scmp.eq.s32.totalorder %s16, 0
    %p58 = por %p56, %p57
    %p59 = scmp.ne.s32.totalorder %s47, %s48
    %p60 = scmp.eq.s32.totalorder %s17, 1
    %p61 = por %p59, %p60
    %p63 = scmp.ne.s32.totalorder %s48, %s62
    %p64 = scmp.eq.s32.totalorder %s17, 0
    %p65 = por %p63, %p64
    %s67 = sadd.s32 %s66, 1
    %p70 = scmp.eq.s32.totalorder %s11, 1
    %p71 = scmp.ne.s32.totalorder %s66, %s68
    %p72 = scmp.eq.s32.totalorder %s11, 0
    %p73 = por %p71, %p72
    %p74 = scmp.ne.s32.totalorder %s66, %s68
    %p75 = scmp.eq.s32.totalorder %s16, 1
    %p76 = por %p74, %p75
    %p77 = scmp.ne.s32.totalorder %s68, %s69
    %p78 = scmp.eq.s32.totalorder %s16, 0
    %p79 = por %p77, %p78
    %p80 = scmp.ne.s32.totalorder %s68, %s69
    %p81 = scmp.eq.s32.totalorder %s17, 1
    %p82 = por %p80, %p81
    %p84 = scmp.ne.s32.totalorder %s69, %s83
    %p85 = scmp.eq.s32.totalorder %s17, 0
    %p86 = por %p84, %p85
    %s88 = sadd.s32 %s87, 1
    %p91 = scmp.eq.s32.totalorder %s11, 1
    %p92 = scmp.ne.s32.totalorder %s87, %s89
    %p93 = scmp.eq.s32.totalorder %s11, 0
    %p94 = por %p92, %p93
    %p95 = scmp.ne.s32.totalorder %s87, %s89
    %p96 = scmp.eq.s32.totalorder %s16, 1
    %p97 = por %p95, %p96
    %p98 = scmp.ne.s32.totalorder %s89, %s90
    %p99 = scmp.eq.s32.totalorder %s16, 0
    %p100 = por %p98, %p99
    %p101 = scmp.ne.s32.totalorder %s89, %s90
    %p102 = scmp.eq.s32.totalorder %s17, 1
    %p103 = por %p101, %p102
    %p105 = scmp.ne.s32.totalorder %s90, %s104
    %p106 = scmp.eq.s32.totalorder %s17, 0
    %p107 = por %p105, %p106
    %s109 = sadd.s32 %s108, 1
    %p112 = scmp.eq.s32.totalorder %s11, 1
    %p113 = scmp.ne.s32.totalorder %s108, %s110
    %p114 = scmp.eq.s32.totalorder %s11, 0
    %p115 = por %p113, %p114
    %p116 = scmp.ne.s32.totalorder %s108, %s110
    %p117 = scmp.eq.s32.totalorder %s16, 1
    %p118 = por %p116, %p117
    %p119 = scmp.ne.s32.totalorder %s110, %s111
    %p120 = scmp.eq.s32.totalorder %s16, 0
    %p121 = por %p119, %p120
    %p122 = scmp.ne.s32.totalorder %s110, %s111
    %p123 = scmp.eq.s32.totalorder %s17, 1
    %p124 = por %p122, %p123
    %p126 = scmp.ne.s32.totalorder %s111, %s125
    %p127 = scmp.eq.s32.totalorder %s17, 0
    %p128 = por %p126, %p127
    %s129 = ssub.s32 %s11, %s18
    %p130 = scmp.eq.s32.totalorder %s129, 0
    %s132 = sadd.s32 %s131, 1
    %s133 = scalar_select %p130, %s131, %s132
    %p136 = pneg %p130
    %p137 = scmp.eq.s32.totalorder %s11, 1
    %p138 = por %p136, %p137
    %p139 = scmp.ne.s32.totalorder %s131, %s134
    %p140 = scmp.eq.s32.totalorder %s11, 0
    %p141 = por %p139, %p140
    %p142 = scmp.ne.s32.totalorder %s131, %s134
    %p143 = scmp.eq.s32.totalorder %s16, 1
    %p144 = por %p142, %p143
    %p145 = scmp.ne.s32.totalorder %s134, %s135
    %p146 = scmp.eq.s32.totalorder %s16, 0
    %p147 = por %p145, %p146
    %p148 = scmp.ne.s32.totalorder %s134, %s135
    %p149 = scmp.eq.s32.totalorder %s17, 1
    %p150 = por %p148, %p149
    %p152 = scmp.ne.s32.totalorder %s135, %s151
    %p153 = scmp.eq.s32.totalorder %s17, 0
    %p154 = por %p152, %p153
    %p155 = scmp.le.s32.totalorder 1, %s11
    %p156 = scmp.lt.s32.totalorder %s11, 3
    %p157 = pnand %p155, %p156
    %p158 = pneg %p157
    // Predicated region
    $region9: #{mlp_pallas.1} parent=5 // pred_check
      _
    $region10: #{mlp_pallas.1} parent=5 // pred_check_branch
      %160 = sbr.rel (%p157) target = $region12
    $region11: #{mlp_pallas.1} parent=5 // pred_region
      %s161 = ssub.s32 %s11, 1
      // Predicated region
      $region13: #{mlp_pallas.1} parent=11 // pred_check
        %p162 = pneg %p58
      $region14: #{mlp_pallas.1} parent=11 // pred_check_branch
        %164 = sbr.rel (%p162) target = $region16
      $region15: #{mlp_pallas.1} parent=11 // pred_region
        _
      $region16: #{mlp_pallas.1} parent=11 // pred_fallthru
        _
      // Predicated region
      $region17: #{mlp_pallas.1} parent=11 // pred_check
        %p165 = pneg %p79
      $region18: #{mlp_pallas.1} parent=11 // pred_check_branch
        %167 = sbr.rel (%p165) target = $region20
      $region19: #{mlp_pallas.1} parent=11 // pred_region
        _
      $region20: #{mlp_pallas.1} parent=11 // pred_fallthru
        _
      // Predicated region
      $region21: #{mlp_pallas.1} parent=11 // pred_check
        %p168 = pneg %p100
      $region22: #{mlp_pallas.1} parent=11 // pred_check_branch
        %170 = sbr.rel (%p168) target = $region24
      $region23: #{mlp_pallas.1} parent=11 // pred_region
        _
      $region24: #{mlp_pallas.1} parent=11 // pred_fallthru
        _
      // Predicated region
      $region25: #{mlp_pallas.1} parent=11 // pred_check
        %p171 = pneg %p121
      $region26: #{mlp_pallas.1} parent=11 // pred_check_branch
        %173 = sbr.rel (%p171) target = $region28
      $region27: #{mlp_pallas.1} parent=11 // pred_region
        _
      $region28: #{mlp_pallas.1} parent=11 // pred_fallthru
        _
    $region12: #{mlp_pallas.1} parent=5 // pred_fallthru
      _
    %p174 = scmp.lt.s32.totalorder %s11, 2
    // Predicated region
    $region29: #{mlp_pallas.1} parent=5 // pred_check
      %p175 = pneg %p174
    $region30: #{mlp_pallas.1} parent=5 // pred_check_branch
      %177 = sbr.rel (%p175) target = $region32
    $region31: #{mlp_pallas.1} parent=5 // pred_region
      // Predicated region
      $region33: #{mlp_pallas.1} parent=31 // pred_check
        %p178 = pneg %p31
      $region34: #{mlp_pallas.1} parent=31 // pred_check_branch
        %180 = sbr.rel (%p178) target = $region36
      $region35: #{mlp_pallas.1} parent=31 // pred_region
        %s181 = smul.u32 8, %s11
        %p182 = scmp.lt.s32.totalorder %s181, 15
        %s183 = scalar_select %p182, %s181, 15
        %s184 = smul.addr %s183, 4
        %s185 = scalar_lea.vmem %s0, %s184
        %s186 = smul.u32 8, %s11
      $region36: #{mlp_pallas.1} parent=31 // pred_fallthru
        _
    $region32: #{mlp_pallas.1} parent=5 // pred_fallthru
      _
    %p187 = scmp.le.s32.totalorder 1, %s11
    %p188 = scmp.lt.s32.totalorder %s11, 3
    %p189 = pnand %p187, %p188
    %p190 = pneg %p189
    // Predicated region
    $region37: #{mlp_pallas.1} parent=5 // pred_check
      _
    $region38: #{mlp_pallas.1} parent=5 // pred_check_branch
      %192 = sbr.rel (%p189) target = $region40
    $region39: #{mlp_pallas.1} parent=5 // pred_region
      %s193 = ssub.s32 %s11, 1
      %s194 = smul.u32 8, %s16
      %p195 = scmp.lt.s32.totalorder %s194, 15
      %s196 = scalar_select %p195, %s194, 15
      %s197 = smul.addr %s196, 4
      %s198 = scalar_lea.vmem %s0, %s197
      %p199 = pneg %p37
      %p200 = pneg %p34
      %p201 = pneg %p58
      %p202 = pneg %p55
      %p203 = pneg %p79
      %p204 = pneg %p76
      %p205 = pneg %p100
      %p206 = pneg %p97
      %p207 = pneg %p121
      %p208 = pneg %p118
      %p209 = pneg %p147
      %p210 = pneg %p144
      %s211 = smul.u32 8, %s16
      %p212 = scmp.lt.s32.totalorder %s211, 15
      %s213 = scalar_select %p212, %s211, 15
      %s214 = smul.addr %s213, 8
      %s215 = scalar_lea.vmem %s5, %s214
      %s216 = smul.u32 8, %s16
      %p217 = scmp.lt.s32.totalorder %s216, 15
      %s218 = scalar_select %p217, %s216, 15
      %s219 = smul.addr %s218, 4
      %s220 = scalar_lea.vmem %s0, %s219
      %s221 = smul.u32 8, %s16
      %s222 = smul.u32 8, %s16
      %p223 = scmp.lt.s32.totalorder %s222, 15
      %s224 = scalar_select %p223, %s222, 15
      %s225 = smul.addr %s224, 8
      %s226 = scalar_lea.vmem %s5, %s225
      %s227 = smul.u32 8, %s16
      %v229 = vld [vmem:[%s220] sm:$0xf]
      %v230 = vld [vmem:[%s220 + $0x4] sm:$0xf]
      %v231 = vld [vmem:[%s220 + $0x8] sm:$0xf]
      %v232 = vld [vmem:[%s220 + $0xc] sm:$0xf]
      %v233 = vld [vmem:[%s220 + $0x10] sm:$0xf]
      %v234 = vld [vmem:[%s220 + $0x14] sm:$0xf]
      %v235 = vld [vmem:[%s220 + $0x18] sm:$0xf]
      %v236 = vld [vmem:[%s220 + $0x1c] sm:$0xf]
      %v237 = vld [vmem:[%s1] sm:$0xf]
      %v238 = vld [vmem:[%s1 + $0x4] sm:$0xf]
      %v239 = vld [vmem:[%s1 + $0x8] sm:$0xf]
      %v240 = vld [vmem:[%s1 + $0xc] sm:$0xf]
      %v241 = vld [vmem:[%s2] sm:$0x1]
      %v243 = vlaneseq
      %v244 = vshrl.u32 %v243, 7
      %v245 = vsub.s32 0, %v244
      %v246 = vrot.slane %v241, %v245
      %v256 = vunpack.c.l.b16 %v229
      %v257 = vunpack.c.l.b16 %v230
      %v258 = vunpack.c.l.b16 %v231
      %v259 = vunpack.c.l.b16 %v232
      %v260 = vunpack.c.l.b16 %v233
      %v261 = vunpack.c.l.b16 %v234
      %v262 = vunpack.c.l.b16 %v235
      %v263 = vunpack.c.l.b16 %v236
      %v264 = vpack.c.b16 %v257, %v256
      %v265 = vpack.c.b16 %v259, %v258
      %v266 = vpack.c.b16 %v261, %v260
      %v267 = vpack.c.b16 %v263, %v262
      %v272 = vunpack.c.l.b16 %v237
      %v273 = vunpack.c.l.b16 %v238
      %v274 = vunpack.c.l.b16 %v239
      %v275 = vunpack.c.l.b16 %v240
      %v276 = vpack.c.b16 %v273, %v272
      %v277 = vpack.c.b16 %v275, %v274
      %vm280 = vcmask 261120
      %v282 = vsel %vm280, %v264, 0
      %v285 = vsel %vm280, %v265, 0
      %v288 = vsel %vm280, %v266, 0
      %v291 = vsel %vm280, %v267, 0
      %293 = vmatprep.subr.bf16.mxu0 0
      %294 = vmatpush1.bf16.msra.mxu0 %v276
      %295 = vmatprep.subr.bf16.mxu0 0
      %296 = vmatpush1.bf16.msra.mxu0 %v277
      %297 = vmatprep.subr.bf16.mxu0 0
      %298 = vmatpush1.bf16.msra.mxu0 0
      %299 = vmatprep.subr.bf16.mxu0 0
      %300 = vmatpush1.bf16.msra.mxu0 0
      %301 = vmatprep.subr.bf16.mxu0 0
      %302 = vmatpush1.bf16.msra.mxu0 0
      %303 = vmatprep.subr.bf16.mxu0 0
      %304 = vmatpush1.bf16.msra.mxu0 0
      %305 = vmatprep.subr.bf16.mxu0 0
      %306 = vmatpush1.bf16.msra.mxu0 0
      %307 = vmatprep.subr.bf16.mxu0 0
      %308 = vmatpush1.bf16.msra.mxu0 0
      %309 = vmatprep.subr.bf16.mxu0 0
      %310 = vmatpush1.bf16.msra.mxu0 0
      %311 = vmatprep.subr.bf16.mxu0 0
      %312 = vmatpush1.bf16.msra.mxu0 0
      %313 = vmatprep.subr.bf16.mxu0 0
      %314 = vmatpush1.bf16.msra.mxu0 0
      %315 = vmatprep.subr.bf16.mxu0 0
      %316 = vmatpush1.bf16.msra.mxu0 0
      %317 = vmatprep.subr.bf16.mxu0 0
      %318 = vmatpush1.bf16.msra.mxu0 0
      %319 = vmatprep.subr.bf16.mxu0 0
      %320 = vmatpush1.bf16.msra.mxu0 0
      %321 = vmatprep.subr.bf16.mxu0 0
      %322 = vmatpush1.bf16.msra.mxu0 0
      %323 = vmatprep.subr.bf16.mxu0 0
      %324 = vmatpush1.bf16.msra.mxu0 0
      %325 = vmatprep.mubr.bf16.mxu0 0
      %326 = vmatmul.mubr.bf16.gmra.mrb[0].mxu0 %v282
      %v327 = vpop.f32.mrb[0].mxu0
      %v328 = vadd.f32 %v246, %v327
      %v329 = vpop.f32.mrb[0].mxu0
      %v330 = vpop.f32.mrb[0].mxu0
      %v331 = vadd.f32 %v246, %v330
      %v332 = vpop.f32.mrb[0].mxu0
      %333 = vmatprep.mubr.bf16.mxu0 0
      %334 = vmatmul.mubr.bf16.gmra.mrb[0].mxu0 %v285
      %v335 = vpop.f32.mrb[0].mxu0
      %v336 = vadd.f32 %v246, %v335
      %v337 = vpop.f32.mrb[0].mxu0
      %v338 = vpop.f32.mrb[0].mxu0
      %v339 = vadd.f32 %v246, %v338
      %v340 = vpop.f32.mrb[0].mxu0
      %341 = vmatprep.mubr.bf16.mxu0 0
      %342 = vmatmul.mubr.bf16.gmra.mrb[0].mxu0 %v288
      %v343 = vpop.f32.mrb[0].mxu0
      %v344 = vadd.f32 %v246, %v343
      %v345 = vpop.f32.mrb[0].mxu0
      %v346 = vpop.f32.mrb[0].mxu0
      %v347 = vadd.f32 %v246, %v346
      %v348 = vpop.f32.mrb[0].mxu0
      %349 = vmatprep.mubr.bf16.mxu0 0
      %350 = vmatmul.mubr.bf16.gmra.mrb[0].mxu0 %v291
      %v351 = vpop.f32.mrb[0].mxu0
      %v352 = vadd.f32 %v246, %v351
      %v353 = vpop.f32.mrb[0].mxu0
      %v354 = vpop.f32.mrb[0].mxu0
      %v355 = vadd.f32 %v246, %v354
      %v356 = vpop.f32.mrb[0].mxu0
      %357 = vdwg.mxu0
      %v358 = vmul.f32 %v328, 0.5
      %v359 = vmul.f32 %v331, 0.5
      %v360 = vmul.f32 %v336, 0.5
      %v361 = vmul.f32 %v339, 0.5
      %v362 = vmul.f32 %v344, 0.5
      %v363 = vmul.f32 %v347, 0.5
      %v364 = vmul.f32 %v352, 0.5
      %v365 = vmul.f32 %v355, 0.5
      %v366 = vmul.f32 %v328, 0.70710677
      %v367 = vmul.f32 %v331, 0.70710677
      %v368 = vmul.f32 %v336, 0.70710677
      %v369 = vmul.f32 %v339, 0.70710677
      %v370 = vmul.f32 %v344, 0.70710677
      %v371 = vmul.f32 %v347, 0.70710677
      %v372 = vmul.f32 %v352, 0.70710677
      %v373 = vmul.f32 %v355, 0.70710677
      %v374 = vand.u32 2147483647, %v366
      %v375 = vand.u32 2147483647, %v367
      %v376 = vand.u32 2147483647, %v368
      %v377 = vand.u32 2147483647, %v369
      %v378 = vand.u32 2147483647, %v370
      %v379 = vand.u32 2147483647, %v371
      %v380 = vand.u32 2147483647, %v372
      %v381 = vand.u32 2147483647, %v373
      %v382 = vmul.f32 %v374, 0.3275911
      %v383 = vmul.f32 %v375, 0.3275911
      %v384 = vmul.f32 %v376, 0.3275911
      %v385 = vmul.f32 %v377, 0.3275911
      %v386 = vmul.f32 %v378, 0.3275911
      %v387 = vmul.f32 %v379, 0.3275911
      %v388 = vmul.f32 %v380, 0.3275911
      %v389 = vmul.f32 %v381, 0.3275911
      %v390 = vadd.f32 %v382, 1.0
      %v391 = vadd.f32 %v383, 1.0
      %v392 = vadd.f32 %v384, 1.0
      %v393 = vadd.f32 %v385, 1.0
      %v394 = vadd.f32 %v386, 1.0
      %v395 = vadd.f32 %v387, 1.0
      %v396 = vadd.f32 %v388, 1.0
      %v397 = vadd.f32 %v389, 1.0
      %v398 = vrcp.pop %v390
      %v399 = vrcp.pop %v391
      %v400 = vrcp.pop %v392
      %v401 = vrcp.pop %v393
      %v402 = vrcp.pop %v394
      %v403 = vrcp.pop %v395
      %v404 = vrcp.pop %v396
      %v405 = vrcp.pop %v397
      %v406 = vmul.f32 %v398, 1.0614054
      %v407 = vmul.f32 %v399, 1.0614054
      %v408 = vmul.f32 %v400, 1.0614054
      %v409 = vmul.f32 %v401, 1.0614054
      %v410 = vmul.f32 %v402, 1.0614054
      %v411 = vmul.f32 %v403, 1.0614054
      %v412 = vmul.f32 %v404, 1.0614054
      %v413 = vmul.f32 %v405, 1.0614054
      %v414 = vadd.f32 %v406, -1.4531521
      %v415 = vadd.f32 %v407, -1.4531521
      %v416 = vadd.f32 %v408, -1.4531521
      %v417 = vadd.f32 %v409, -1.4531521
      %v418 = vadd.f32 %v410, -1.4531521
      %v419 = vadd.f32 %v411, -1.4531521
      %v420 = vadd.f32 %v412, -1.4531521
      %v421 = vadd.f32 %v413, -1.4531521
      %v422 = vmul.f32 %v414, %v398
      %v423 = vmul.f32 %v415, %v399
      %v424 = vmul.f32 %v416, %v400
      %v425 = vmul.f32 %v417, %v401
      %v426 = vmul.f32 %v418, %v402
      %v427 = vmul.f32 %v419, %v403
      %v428 = vmul.f32 %v420, %v404
      %v429 = vmul.f32 %v421, %v405
      %v430 = vadd.f32 %v422, 1.4214138
      %v431 = vadd.f32 %v423, 1.4214138
      %v432 = vadd.f32 %v424, 1.4214138
      %v433 = vadd.f32 %v425, 1.4214138
      %v434 = vadd.f32 %v426, 1.4214138
      %v435 = vadd.f32 %v427, 1.4214138
      %v436 = vadd.f32 %v428, 1.4214138
      %v437 = vadd.f32 %v429, 1.4214138
      %v438 = vmul.f32 %v430, %v398
      %v439 = vmul.f32 %v431, %v399
      %v440 = vmul.f32 %v432, %v400
      %v441 = vmul.f32 %v433, %v401
      %v442 = vmul.f32 %v434, %v402
      %v443 = vmul.f32 %v435, %v403
      %v444 = vmul.f32 %v436, %v404
      %v445 = vmul.f32 %v437, %v405
      %v446 = vadd.f32 %v438, -0.28449672
      %v447 = vadd.f32 %v439, -0.28449672
      %v448 = vadd.f32 %v440, -0.28449672
      %v449 = vadd.f32 %v441, -0.28449672
      %v450 = vadd.f32 %v442, -0.28449672
      %v451 = vadd.f32 %v443, -0.28449672
      %v452 = vadd.f32 %v444, -0.28449672
      %v453 = vadd.f32 %v445, -0.28449672
      %v454 = vmul.f32 %v446, %v398
      %v455 = vmul.f32 %v447, %v399
      %v456 = vmul.f32 %v448, %v400
      %v457 = vmul.f32 %v449, %v401
      %v458 = vmul.f32 %v450, %v402
      %v459 = vmul.f32 %v451, %v403
      %v460 = vmul.f32 %v452, %v404
      %v461 = vmul.f32 %v453, %v405
      %v462 = vadd.f32 %v454, 0.2548296
      %v463 = vadd.f32 %v455, 0.2548296
      %v464 = vadd.f32 %v456, 0.2548296
      %v465 = vadd.f32 %v457, 0.2548296
      %v466 = vadd.f32 %v458, 0.2548296
      %v467 = vadd.f32 %v459, 0.2548296
      %v468 = vadd.f32 %v460, 0.2548296
      %v469 = vadd.f32 %v461, 0.2548296
      %v470 = vmul.f32 %v462, %v398
      %v471 = vmul.f32 %v463, %v399
      %v472 = vmul.f32 %v464, %v400
      %v473 = vmul.f32 %v465, %v401
      %v474 = vmul.f32 %v466, %v402
      %v475 = vmul.f32 %v467, %v403
      %v476 = vmul.f32 %v468, %v404
      %v477 = vmul.f32 %v469, %v405
      %v478 = vsub.f32 0.0, %v374
      %v479 = vsub.f32 0.0, %v375
      %v480 = vsub.f32 0.0, %v376
      %v481 = vsub.f32 0.0, %v377
      %v482 = vsub.f32 0.0, %v378
      %v483 = vsub.f32 0.0, %v379
      %v484 = vsub.f32 0.0, %v380
      %v485 = vsub.f32 0.0, %v381
      %v486 = vmul.f32 %v478, %v374
      %v487 = vmul.f32 %v479, %v375
      %v488 = vmul.f32 %v480, %v376
      %v489 = vmul.f32 %v481, %v377
      %v490 = vmul.f32 %v482, %v378
      %v491 = vmul.f32 %v483, %v379
      %v492 = vmul.f32 %v484, %v380
      %v493 = vmul.f32 %v485, %v381
      %v494 = vmul.f32 %v486, 1.442695
      %v495 = vpow.pop %v494
      %v496 = vmul.f32 %v487, 1.442695
      %v497 = vpow.pop %v496
      %v498 = vmul.f32 %v488, 1.442695
      %v499 = vpow.pop %v498
      %v500 = vmul.f32 %v489, 1.442695
      %v501 = vpow.pop %v500
      %v502 = vmul.f32 %v490, 1.442695
      %v503 = vpow.pop %v502
      %v504 = vmul.f32 %v491, 1.442695
      %v505 = vpow.pop %v504
      %v506 = vmul.f32 %v492, 1.442695
      %v507 = vpow.pop %v506
      %v508 = vmul.f32 %v493, 1.442695
      %v509 = vpow.pop %v508
      %v510 = vmul.f32 %v470, %v495
      %v511 = vmul.f32 %v471, %v497
      %v512 = vmul.f32 %v472, %v499
      %v513 = vmul.f32 %v473, %v501
      %v514 = vmul.f32 %v474, %v503
      %v515 = vmul.f32 %v475, %v505
      %v516 = vmul.f32 %v476, %v507
      %v517 = vmul.f32 %v477, %v509
      %v518 = vsub.f32 1.0, %v510
      %v519 = vsub.f32 1.0, %v511
      %v520 = vsub.f32 1.0, %v512
      %v521 = vsub.f32 1.0, %v513
      %v522 = vsub.f32 1.0, %v514
      %v523 = vsub.f32 1.0, %v515
      %v524 = vsub.f32 1.0, %v516
      %v525 = vsub.f32 1.0, %v517
      %vm526 = vcmp.ge.f32.partialorder %v366, 0.0
      %vm527 = vcmp.ge.f32.partialorder %v367, 0.0
      %vm528 = vcmp.ge.f32.partialorder %v368, 0.0
      %vm529 = vcmp.ge.f32.partialorder %v369, 0.0
      %vm530 = vcmp.ge.f32.partialorder %v370, 0.0
      %vm531 = vcmp.ge.f32.partialorder %v371, 0.0
      %vm532 = vcmp.ge.f32.partialorder %v372, 0.0
      %vm533 = vcmp.ge.f32.partialorder %v373, 0.0
      %v534 = vsub.f32 0.0, %v518
      %v535 = vsub.f32 0.0, %v519
      %v536 = vsub.f32 0.0, %v520
      %v537 = vsub.f32 0.0, %v521
      %v538 = vsub.f32 0.0, %v522
      %v539 = vsub.f32 0.0, %v523
      %v540 = vsub.f32 0.0, %v524
      %v541 = vsub.f32 0.0, %v525
      %v542 = vsel %vm526, %v518, %v534
      %v543 = vsel %vm527, %v519, %v535
      %v544 = vsel %vm528, %v520, %v536
      %v545 = vsel %vm529, %v521, %v537
      %v546 = vsel %vm530, %v522, %v538
      %v547 = vsel %vm531, %v523, %v539
      %v548 = vsel %vm532, %v524, %v540
      %v549 = vsel %vm533, %v525, %v541
      %v550 = vadd.f32 %v542, 1.0
      %v551 = vadd.f32 %v543, 1.0
      %v552 = vadd.f32 %v544, 1.0
      %v553 = vadd.f32 %v545, 1.0
      %v554 = vadd.f32 %v546, 1.0
      %v555 = vadd.f32 %v547, 1.0
      %v556 = vadd.f32 %v548, 1.0
      %v557 = vadd.f32 %v549, 1.0
      %v558 = vmul.f32 %v358, %v550
      %v559 = vmul.f32 %v359, %v551
      %v560 = vmul.f32 %v360, %v552
      %v561 = vmul.f32 %v361, %v553
      %v562 = vmul.f32 %v362, %v554
      %v563 = vmul.f32 %v363, %v555
      %v564 = vmul.f32 %v364, %v556
      %v565 = vmul.f32 %v365, %v557
      %v566 = vpack.c.bf16 %v559, %v558
      %v567 = vpack.c.bf16 %v561, %v560
      %v568 = vpack.c.bf16 %v563, %v562
      %v569 = vpack.c.bf16 %v565, %v564
      %v570 = vld [vmem:[%s3] sm:$0xf]
      %v571 = vld [vmem:[%s3 + $0x4] sm:$0xf]
      %v572 = vld [vmem:[%s3 + $0x8] sm:$0xf]
      %v573 = vld [vmem:[%s3 + $0xc] sm:$0xf]
      %v574 = vld [vmem:[%s3 + $0x10] sm:$0xf]
      %v575 = vld [vmem:[%s3 + $0x14] sm:$0xf]
      %v576 = vld [vmem:[%s3 + $0x18] sm:$0xf]
      %v577 = vld [vmem:[%s3 + $0x1c] sm:$0xf]
      %v578 = vld [vmem:[%s3 + $0x20] sm:$0xf]
      %v579 = vld [vmem:[%s3 + $0x24] sm:$0xf]
      %v580 = vld [vmem:[%s3 + $0x28] sm:$0xf]
      %v581 = vld [vmem:[%s3 + $0x2c] sm:$0xf]
      %v582 = vld [vmem:[%s3 + $0x30] sm:$0xf]
      %v583 = vld [vmem:[%s3 + $0x34] sm:$0xf]
      %v584 = vld [vmem:[%s3 + $0x38] sm:$0xf]
      %v585 = vld [vmem:[%s3 + $0x3c] sm:$0xf]
      %v586 = vld [vmem:[%s4] sm:$0x1]
      %v588 = vlaneseq
      %v589 = vshrl.u32 %v588, 7
      %v590 = vsub.s32 0, %v589
      %v591 = vrot.slane %v586, %v590
      %v609 = vunpack.c.l.b16 %v570
      %v610 = vunpack.c.l.b16 %v571
      %v611 = vunpack.c.l.b16 %v572
      %v612 = vunpack.c.l.b16 %v573
      %v613 = vunpack.c.l.b16 %v574
      %v614 = vunpack.c.l.b16 %v575
      %v615 = vunpack.c.l.b16 %v576
      %v616 = vunpack.c.l.b16 %v577
      %v617 = vunpack.c.l.b16 %v578
      %v618 = vunpack.c.l.b16 %v579
      %v619 = vunpack.c.l.b16 %v580
      %v620 = vunpack.c.l.b16 %v581
      %v621 = vunpack.c.l.b16 %v582
      %v622 = vunpack.c.l.b16 %v583
      %v623 = vunpack.c.l.b16 %v584
      %v624 = vunpack.c.l.b16 %v585
      %v625 = vpack.c.b16 %v610, %v609
      %v626 = vpack.c.b16 %v612, %v611
      %v627 = vpack.c.b16 %v614, %v613
      %v628 = vpack.c.b16 %v616, %v615
      %v629 = vpack.c.b16 %v618, %v617
      %v630 = vpack.c.b16 %v620, %v619
      %v631 = vpack.c.b16 %v622, %v621
      %v632 = vpack.c.b16 %v624, %v623
      %641 = vmatprep.subr.bf16.mxu0 0
      %642 = vmatpush1.bf16.msra.mxu0 %v625
      %643 = vmatprep.subr.bf16.mxu0 0
      %644 = vmatpush1.bf16.msra.mxu0 %v626
      %645 = vmatprep.subr.bf16.mxu0 0
      %646 = vmatpush1.bf16.msra.mxu0 %v627
      %647 = vmatprep.subr.bf16.mxu0 0
      %648 = vmatpush1.bf16.msra.mxu0 %v628
      %649 = vmatprep.subr.bf16.mxu0 0
      %650 = vmatpush1.bf16.msra.mxu0 %v629
      %651 = vmatprep.subr.bf16.mxu0 0
      %652 = vmatpush1.bf16.msra.mxu0 %v630
      %653 = vmatprep.subr.bf16.mxu0 0
      %654 = vmatpush1.bf16.msra.mxu0 %v631
      %655 = vmatprep.subr.bf16.mxu0 0
      %656 = vmatpush1.bf16.msra.mxu0 %v632
      %657 = vmatprep.subr.bf16.mxu0 0
      %658 = vmatpush1.bf16.msra.mxu0 0
      %659 = vmatprep.subr.bf16.mxu0 0
      %660 = vmatpush1.bf16.msra.mxu0 0
      %661 = vmatprep.subr.bf16.mxu0 0
      %662 = vmatpush1.bf16.msra.mxu0 0
      %663 = vmatprep.subr.bf16.mxu0 0
      %664 = vmatpush1.bf16.msra.mxu0 0
      %665 = vmatprep.subr.bf16.mxu0 0
      %666 = vmatpush1.bf16.msra.mxu0 0
      %667 = vmatprep.subr.bf16.mxu0 0
      %668 = vmatpush1.bf16.msra.mxu0 0
      %669 = vmatprep.subr.bf16.mxu0 0
      %670 = vmatpush1.bf16.msra.mxu0 0
      %671 = vmatprep.subr.bf16.mxu0 0
      %672 = vmatpush1.bf16.msra.mxu0 0
      %673 = vmatprep.mubr.bf16.mxu0 0
      %674 = vmatmul.mubr.bf16.gmra.mrb[0].mxu0 %v566
      %v675 = vpop.f32.mrb[0].mxu0
      %v676 = vadd.f32 %v591, %v675
      %v677 = vpop.f32.mrb[0].mxu0
      %v678 = vpop.f32.mrb[0].mxu0
      %v679 = vadd.f32 %v591, %v678
      %v680 = vpop.f32.mrb[0].mxu0
      %681 = vmatprep.mubr.bf16.mxu0 0
      %682 = vmatmul.mubr.bf16.gmra.mrb[0].mxu0 %v567
      %v683 = vpop.f32.mrb[0].mxu0
      %v684 = vadd.f32 %v591, %v683
      %v685 = vpop.f32.mrb[0].mxu0
      %v686 = vpop.f32.mrb[0].mxu0
      %v687 = vadd.f32 %v591, %v686
      %v688 = vpop.f32.mrb[0].mxu0
      %689 = vmatprep.mubr.bf16.mxu0 0
      %690 = vmatmul.mubr.bf16.gmra.mrb[0].mxu0 %v568
      %v691 = vpop.f32.mrb[0].mxu0
      %v692 = vadd.f32 %v591, %v691
      %v693 = vpop.f32.mrb[0].mxu0
      %v694 = vpop.f32.mrb[0].mxu0
      %v695 = vadd.f32 %v591, %v694
      %v696 = vpop.f32.mrb[0].mxu0
      %697 = vmatprep.mubr.bf16.mxu0 0
      %698 = vmatmul.mubr.bf16.gmra.mrb[0].mxu0 %v569
      %v699 = vpop.f32.mrb[0].mxu0
      %v700 = vadd.f32 %v591, %v699
      %v701 = vpop.f32.mrb[0].mxu0
      %v702 = vpop.f32.mrb[0].mxu0
      %v703 = vadd.f32 %v591, %v702
      %v704 = vpop.f32.mrb[0].mxu0
      %705 = vdwg.mxu0
      %706 = vst.msk [vmem:[%s226] sm:$0xff] %vm280, %v676
      %707 = vst.msk [vmem:[%s226 + $0x8] sm:$0xff] %vm280, %v679
      %708 = vst.msk [vmem:[%s226 + $0x10] sm:$0xff] %vm280, %v684
      %709 = vst.msk [vmem:[%s226 + $0x18] sm:$0xff] %vm280, %v687
      %710 = vst.msk [vmem:[%s226 + $0x20] sm:$0xff] %vm280, %v692
      %711 = vst.msk [vmem:[%s226 + $0x28] sm:$0xff] %vm280, %v695
      %712 = vst.msk [vmem:[%s226 + $0x30] sm:$0xff] %vm280, %v700
      %713 = vst.msk [vmem:[%s226 + $0x38] sm:$0xff] %vm280, %v703
      %s714 = smul.u32 8, %s16
      %p715 = scmp.lt.s32.totalorder %s714, 15
      %s716 = scalar_select %p715, %s714, 15
      %s717 = smul.addr %s716, 8
      %s718 = scalar_lea.vmem %s5, %s717
      // Predicated region
      $region41: #{mlp_pallas.1} parent=39 // pred_check
        %p719 = pneg %p144
      $region42: #{mlp_pallas.1} parent=39 // pred_check_branch
        %721 = sbr.rel (%p719) target = $region44
      $region43: #{mlp_pallas.1} parent=39 // pred_region
        %s722 = smul.u32 8, %s16
      $region44: #{mlp_pallas.1} parent=39 // pred_fallthru
        _
    $region40: #{mlp_pallas.1} parent=5 // pred_fallthru
      _
    %p723 = scmp.le.s32.totalorder 2, %s11
    // Predicated region
    $region45: #{mlp_pallas.1} parent=5 // pred_check
      %p724 = pneg %p723
    $region46: #{mlp_pallas.1} parent=5 // pred_check_branch
      %726 = sbr.rel (%p724) target = $region48
    $region47: #{mlp_pallas.1} parent=5 // pred_region
      %s727 = ssub.s32 %s11, 2
      // Predicated region
      $region49: #{mlp_pallas.1} parent=47 // pred_check
        %p728 = pneg %p150
      $region50: #{mlp_pallas.1} parent=47 // pred_check_branch
        %730 = sbr.rel (%p728) target = $region52
      $region51: #{mlp_pallas.1} parent=47 // pred_region
        %s731 = smul.u32 8, %s17
        %p732 = scmp.lt.s32.totalorder %s731, 15
        %s733 = scalar_select %p732, %s731, 15
        %s734 = smul.addr %s733, 8
        %s735 = scalar_lea.vmem %s5, %s734
      $region52: #{mlp_pallas.1} parent=47 // pred_fallthru
        _
    $region48: #{mlp_pallas.1} parent=5 // pred_fallthru
      _
  $region6: #{mlp_pallas.1} parent=0 // loop_footer
    %s15 = sadd.s32 1, %s11
  $region7: #{mlp_pallas.1} parent=0 // loop_footer_branch
    %10 = sbr.rel target = $region3
  $region8: #{mlp_pallas.1} parent=0 // loop_exit
    _

</llo_original>
